<compile_context>
chip_gen: v7x
topology: tpu7x:2x2x1
jax: 0.10.0
libtpu: 0.0.40
codegen_flags: <defaults>
</compile_context>

<pallas_src>
import functools

import jax
import jax.numpy as jnp
import numpy as np
from jax.experimental import pallas as pl
from jax.experimental.pallas import tpu as pltpu


# ------------------------------- kernel --------------------------------------

def bottleneck_kernel(img_w, x_ref, masks_ref, w1_ref, b1_ref, w2_ref, b2_ref,
                      w3_ref, b3_ref, o_ref):
    """One grid step: bn images processed as one lane-dense (C, bn*HW) slab."""
    bn, _, hw = x_ref.shape
    lanes = bn * hw

    # Gather this block's images into ONE (Cin, bn*HW) slab (aligned VMEM-local
    # lane concat; the 128-lane axis carries bn*HW) so each conv is a single
    # matmul over the whole block — no per-image loop over tiny MXU passes.
    if bn == 1:
        x_cat = x_ref[0]
    else:
        x_cat = jnp.concatenate([x_ref[i] for i in range(bn)], axis=1)
    x_bf = x_cat.astype(jnp.bfloat16)

    w1 = w1_ref[...]            # (width_p, Cin)        bf16
    b1 = b1_ref[...]            # (width_p, 1)          f32
    w2 = w2_ref[...]            # (width_p, 9*width_p)  bf16  (im2col-packed 3x3)
    b2 = b2_ref[...]            # (width_p, 1)          f32
    w3 = w3_ref[...]            # (Cout, width_p)       bf16
    b3 = b3_ref[...]            # (Cout, 1)             f32
    masks = masks_ref[...]      # (9, bn*HW) f32 0/1 edge-validity, host-precomputed

    # --- conv1: 1x1 conv (+ folded BN) + ReLU — one matmul over the block ---
    h1 = jnp.dot(w1, x_bf, preferred_element_type=jnp.float32)
    h1 = jnp.maximum(h1 + b1, 0.0)                       # (width_p, lanes) f32

    # --- conv2: 3x3, stride 1, pad 1 as ONE im2col matmul --------------------
    # Tap value at per-image flat position p is h1[:, p + off]; a static lane
    # roll over the concatenated bn*HW axis supplies the shift.  Valid taps
    # keep 0 <= p+off < HW so they never leave their image; wrapped / neighbor
    # lanes are exactly the masked-out ones.  Mask multiply stays f32 (v5e has
    # no bf16 VPU); pieces are cast to bf16 BEFORE the sublane concat so the
    # patch matrix is assembled and stored at half width.
    offs = [(dh - 1) * img_w + (dw - 1) for dh in range(3) for dw in range(3)]
    pieces = []
    for t, off in enumerate(offs):
        if off == 0:
            pieces.append(h1.astype(jnp.bfloat16))       # center tap: all valid
        else:
            shifted = pltpu.roll(h1, shift=(-off) % lanes, axis=1)        # XLU
            pieces.append((shifted * masks[t:t + 1, :]).astype(jnp.bfloat16))
    patches = jnp.concatenate(pieces, axis=0)            # (9*width_p, lanes) bf16
    # TODO(synk): on v7x (MRB) nine per-tap accumulate-dots can beat this single
    # K=9*width_p dot; the single dot is the better shape on v5e/v6e (MRF).
    h2 = jnp.dot(w2, patches, preferred_element_type=jnp.float32)
    h2 = jnp.maximum(h2 + b2, 0.0)                       # (width_p, lanes) f32

    # --- conv3: 1x1 conv (+ folded BN), no ReLU ---
    h3 = jnp.dot(w3, h2.astype(jnp.bfloat16),
                 preferred_element_type=jnp.float32) + b3            # (Cout, lanes)

    # --- identity residual (downsample is None for this config) + final ReLU ---
    out = jnp.maximum(h3 + x_cat, 0.0)
    if bn == 1:
        o_ref[0] = out
    else:
        for i in range(bn):                              # aligned static lane slices
            o_ref[i] = out[:, i * hw:(i + 1) * hw]


# ------------------------------ helpers ---------------------------------------

def _make_tap_masks(H, W):
    """(9, H*W) f32 validity masks for the 3x3 taps (dh-major, dw-minor)."""
    yy, xx = np.meshgrid(np.arange(H), np.arange(W), indexing="ij")
    yy = yy.reshape(-1)
    xx = xx.reshape(-1)
    rows = []
    for dh in range(3):
        for dw in range(3):
            oy, ox = dh - 1, dw - 1
            valid = ((yy + oy >= 0) & (yy + oy < H) &
                     (xx + ox >= 0) & (xx + ox < W))
            rows.append(valid.astype(np.float32))
    return np.stack(rows, axis=0)


def _pick_batch_block(N, Cin, Cout, HW, width_p):
    """Images per grid step from HBM-traffic, pipelining-depth and VMEM targets."""
    per_image_io = (Cin + Cout) * HW * 4                     # f32 in + out
    # ~2 MB of in+out HBM traffic per step: enough work to amortize per-step
    # overhead while keeping multiple pipelined steps on this HBM-bound kernel.
    bn = max(1, (2 * 1024 * 1024) // per_image_io)
    # keep >= 4 grid steps when the batch allows it (DMA/compute overlap).
    bn = min(bn, max(1, N // 4))
    # VMEM: double-buffered in/out blocks + slab copy + f32 h1/h2/out temps +
    # bf16 patches must fit comfortably (v7x has only 64 MiB physical VMEM).
    per_image_vmem = HW * (3 * (Cin + Cout) * 4
                           + 2 * width_p * 4
                           + 2 * 9 * width_p * 2)
    bn = min(bn, max(1, (40 * 1024 * 1024) // per_image_vmem))
    bn = min(bn, N, 16)                                      # cap static concat fan-in
    while N % bn:
        bn -= 1
    return bn


# ------------------------------- wrapper --------------------------------------

def bottleneck(x_nchw, kparams):
    """x_nchw: (N, C, H, W) float32.  Returns (N, C, H, W) float32."""
    w1t, b1, w2m, b2, w3t, b3 = kparams
    N, Cin, H, W = x_nchw.shape
    width_p = w1t.shape[0]
    Cout = w3t.shape[0]
    assert Cin == Cout, "identity-skip config requires in_channels == out_channels"
    HW = H * W

    # NCHW already has the spatial dims trailing: just view as (N, C, H*W).
    x3 = x_nchw.reshape(N, Cin, HW)

    bn = _pick_batch_block(N, Cin, Cout, HW, width_p)
    grid = (N // bn,)

    # Host-side constant tap masks, tiled across the bn images of a block
    # (lane g belongs to per-image position g % HW).  Same block every grid
    # step -> fetched into VMEM once.
    masks = jnp.asarray(np.tile(_make_tap_masks(H, W), (1, bn)))   # (9, bn*HW)

    flops = 2 * N * HW * (Cin * width_p + 9 * width_p * width_p + width_p * Cout)
    param_bytes = sum(int(p.size) * p.dtype.itemsize for p in kparams)
    bytes_accessed = (int(x3.size) + int(N * Cout * HW)) * 4 + param_bytes \
        + int(masks.size) * 4

    out = pl.pallas_call(
        functools.partial(bottleneck_kernel, W),
        out_shape=jax.ShapeDtypeStruct((N, Cout, HW), jnp.float32),
        grid_spec=pltpu.PrefetchScalarGridSpec(
            num_scalar_prefetch=0,
            grid=grid,
            in_specs=[
                pl.BlockSpec((bn, Cin, HW), lambda i: (i, 0, 0)),
                pl.BlockSpec(masks.shape, lambda i: (0, 0)),
                pl.BlockSpec(w1t.shape, lambda i: (0, 0)),
                pl.BlockSpec(b1.shape, lambda i: (0, 0)),
                pl.BlockSpec(w2m.shape, lambda i: (0, 0)),
                pl.BlockSpec(b2.shape, lambda i: (0, 0)),
                pl.BlockSpec(w3t.shape, lambda i: (0, 0)),
                pl.BlockSpec(b3.shape, lambda i: (0, 0)),
            ],
            out_specs=pl.BlockSpec((bn, Cout, HW), lambda i: (i, 0, 0)),
        ),
        compiler_params=pltpu.CompilerParams(
            dimension_semantics=("parallel",),
            # blocks were sized to fit well under this; leave compiler headroom
            # (v7x physical VMEM is 64 MiB).
            vmem_limit_bytes=48 * 1024 * 1024,
        ),
        cost_estimate=pl.CostEstimate(
            flops=flops, transcendentals=0, bytes_accessed=bytes_accessed),
    )(x3, masks, w1t, b1, w2m, b2, w3t, b3)

    return out.reshape(N, Cout, H, W)


# ------------------------- parameter construction -----------------------------

def make_params(key, cin, cout, width, eps=1e-5):
    ks = jax.random.split(key, 6)

    def bn_params(k, c):
        k1, k2, k3, k4 = jax.random.split(k, 4)
        gamma = jax.random.uniform(k1, (c,), minval=0.5, maxval=1.5)
        beta = jax.random.normal(k2, (c,)) * 0.1
        mean = jax.random.normal(k3, (c,)) * 0.1
        var = jax.random.uniform(k4, (c,), minval=0.5, maxval=1.5)
        return gamma, beta, mean, var

    def fold(w, bnp):
        # w has the out-channel on its last axis; fold eval-mode BN into it.
        gamma, beta, mean, var = bnp
        scale = gamma / jnp.sqrt(var + eps)
        return w * scale, beta - mean * scale

    w1 = jax.random.normal(ks[0], (cin, width)) * 0.1           # 1x1 (Cin, width)
    w2 = jax.random.normal(ks[1], (3, 3, width, width)) * 0.1   # 3x3 (kh,kw,in,out)
    w3 = jax.random.normal(ks[2], (width, cout)) * 0.1          # 1x1 (width, Cout)

    w1f, b1 = fold(w1, bn_params(ks[3], width))
    w2f, b2 = fold(w2, bn_params(ks[4], width))
    w3f, b3 = fold(w3, bn_params(ks[5], cout))

    ref_params = tuple(p.astype(jnp.float32)
                       for p in (w1f, b1, w2f, b2, w3f, b3))

    # Pack for the kernel: pad width to a multiple of 16 with zero rows/cols
    # (exact; keeps bf16 im2col pieces packed-tile aligned), transpose to
    # (out, in), flatten the 3x3 taps into im2col columns, cast the matmul
    # operands to bf16 (biases stay f32).
    width_p = ((width + 15) // 16) * 16

    w1t = jnp.zeros((width_p, cin), jnp.float32).at[:width].set(w1f.T)
    b1p = jnp.zeros((width_p, 1), jnp.float32).at[:width, 0].set(b1)

    w2m = jnp.zeros((width_p, 9 * width_p), jnp.float32)
    for dh in range(3):
        for dw in range(3):
            tap = dh * 3 + dw
            w2m = w2m.at[:width, tap * width_p:tap * width_p + width].set(
                w2f[dh, dw].T)                                   # (out, in)
    b2p = jnp.zeros((width_p, 1), jnp.float32).at[:width, 0].set(b2)

    w3t = jnp.zeros((cout, width_p), jnp.float32).at[:, :width].set(w3f.T)
    b3p = b3.reshape(cout, 1).astype(jnp.float32)

    kparams = (w1t.astype(jnp.bfloat16), b1p,
               w2m.astype(jnp.bfloat16), b2p,
               w3t.astype(jnp.bfloat16), b3p)
    return kparams, ref_params


# ----------------------------- pure-JAX reference -----------------------------

def ref_forward(x, ref_params):
    w1, b1, w2, b2, w3, b3 = ref_params
    dn = ('NCHW', 'OIHW', 'NCHW')

    def conv1x1(y, w, b):
        wk = jnp.transpose(w)[:, :, None, None]                  # (out, in, 1, 1)
        y = jax.lax.conv_general_dilated(y, wk, (1, 1), 'VALID',
                                         dimension_numbers=dn)
        return y + b.reshape(1, -1, 1, 1)

    h = jax.nn.relu(conv1x1(x, w1, b1))
    wk2 = jnp.transpose(w2, (3, 2, 0, 1))                        # OIHW
    h = jax.lax.conv_general_dilated(h, wk2, (1, 1), ((1, 1), (1, 1)),
                                     dimension_numbers=dn) + b2.reshape(1, -1, 1, 1)
    h = jax.nn.relu(h)
    h = conv1x1(h, w3, b3)
    return jax.nn.relu(h + x)


if __name__ == "__main__":
    key = jax.random.PRNGKey(0)
    kx, kp, kx2 = jax.random.split(key, 3)

    N, C, H, W = 2, 16, 16, 16          # in_channels == out_channels == 16
    width = int(C * 0.25)               # expand_ratio = 0.25 -> width = 4

    x = jax.random.normal(kx, (N, C, H, W), dtype=jnp.float32)
    kparams, ref_params = make_params(kp, C, C, width)

    out = jax.block_until_ready(bottleneck(x, kparams))
    ref = ref_forward(x, ref_params)
    assert out.shape == (N, C, H, W)
    # bf16 MXU operands with f32 accumulation vs. pure-f32 reference.
    assert jnp.allclose(out, ref, rtol=5e-2, atol=8e-2), (
        "max abs diff %e" % float(jnp.max(jnp.abs(out - ref))))

    # Second, slightly larger batch: exercises the multi-image (bn > 1) block
    # path and the multi-step pipelined grid.
    x2 = jax.random.normal(kx2, (8, C, H, W), dtype=jnp.float32)
    out2 = jax.block_until_ready(bottleneck(x2, kparams))
    ref2 = ref_forward(x2, ref_params)
    assert jnp.allclose(out2, ref2, rtol=5e-2, atol=8e-2), (
        "max abs diff %e" % float(jnp.max(jnp.abs(out2 - ref2))))

    print("KERNEL_OK")
</pallas_src>

<mosaic_0001>
module attributes {stable_mosaic.version = 11 : i64} {
  func.func @bottleneck_kernel(%arg0: i32, %arg1: memref<1x16x256xf32, #tpu.memory_space<vmem>>, %arg2: memref<9x256xf32, #tpu.memory_space<vmem>>, %arg3: memref<16x16xbf16, #tpu.memory_space<vmem>>, %arg4: memref<16x1xf32, #tpu.memory_space<vmem>>, %arg5: memref<16x144xbf16, #tpu.memory_space<vmem>>, %arg6: memref<16x1xf32, #tpu.memory_space<vmem>>, %arg7: memref<16x16xbf16, #tpu.memory_space<vmem>>, %arg8: memref<16x1xf32, #tpu.memory_space<vmem>>, %arg9: memref<1x16x256xf32, #tpu.memory_space<vmem>>) attributes {dimension_semantics = [#tpu.dimension_semantics<parallel>], iteration_bounds = array<i64: 2>, scalar_prefetch = 0 : i64, scratch_operands = 0 : i64, tpu.core_type = #tpu.core_type<tc>, window_params = [{transform_indices = @transform_0, window_bounds = array<i64: 1, 16, 256>}, {pipeline_mode = #tpu.pipeline_mode<synchronous>, transform_indices = @transform_1, window_bounds = array<i64: 9, 256>}, {pipeline_mode = #tpu.pipeline_mode<synchronous>, transform_indices = @transform_2, window_bounds = array<i64: 16, 16>}, {pipeline_mode = #tpu.pipeline_mode<synchronous>, transform_indices = @transform_3, window_bounds = array<i64: 16, 1>}, {pipeline_mode = #tpu.pipeline_mode<synchronous>, transform_indices = @transform_4, window_bounds = array<i64: 16, 144>}, {pipeline_mode = #tpu.pipeline_mode<synchronous>, transform_indices = @transform_5, window_bounds = array<i64: 16, 1>}, {pipeline_mode = #tpu.pipeline_mode<synchronous>, transform_indices = @transform_6, window_bounds = array<i64: 16, 16>}, {pipeline_mode = #tpu.pipeline_mode<synchronous>, transform_indices = @transform_7, window_bounds = array<i64: 16, 1>}, {transform_indices = @transform_8, window_bounds = array<i64: 1, 16, 256>}]} {
    %c0 = arith.constant 0 : index
    %c0_0 = arith.constant 0 : index
    %c0_1 = arith.constant 0 : index
    %0 = vector.load %arg1[%c0, %c0_0, %c0_1] : memref<1x16x256xf32, #tpu.memory_space<vmem>>, vector<1x16x256xf32>
    %1 = vector.shape_cast %0 : vector<1x16x256xf32> to vector<16x256xf32>
    %2 = arith.truncf %1 : vector<16x256xf32> to vector<16x256xbf16>
    %c0_2 = arith.constant 0 : index
    %c0_3 = arith.constant 0 : index
    %3 = vector.load %arg3[%c0_2, %c0_3] : memref<16x16xbf16, #tpu.memory_space<vmem>>, vector<16x16xbf16>
    %c0_4 = arith.constant 0 : index
    %c0_5 = arith.constant 0 : index
    %4 = vector.load %arg4[%c0_4, %c0_5] : memref<16x1xf32, #tpu.memory_space<vmem>>, vector<16x1xf32>
    %c0_6 = arith.constant 0 : index
    %c0_7 = arith.constant 0 : index
    %5 = vector.load %arg5[%c0_6, %c0_7] : memref<16x144xbf16, #tpu.memory_space<vmem>>, vector<16x144xbf16>
    %c0_8 = arith.constant 0 : index
    %c0_9 = arith.constant 0 : index
    %6 = vector.load %arg6[%c0_8, %c0_9] : memref<16x1xf32, #tpu.memory_space<vmem>>, vector<16x1xf32>
    %c0_10 = arith.constant 0 : index
    %c0_11 = arith.constant 0 : index
    %7 = vector.load %arg7[%c0_10, %c0_11] : memref<16x16xbf16, #tpu.memory_space<vmem>>, vector<16x16xbf16>
    %c0_12 = arith.constant 0 : index
    %c0_13 = arith.constant 0 : index
    %8 = vector.load %arg8[%c0_12, %c0_13] : memref<16x1xf32, #tpu.memory_space<vmem>>, vector<16x1xf32>
    %c0_14 = arith.constant 0 : index
    %c0_15 = arith.constant 0 : index
    %9 = vector.load %arg2[%c0_14, %c0_15] : memref<9x256xf32, #tpu.memory_space<vmem>>, vector<9x256xf32>
    %cst = arith.constant dense<0.000000e+00> : vector<16x256xf32>
    %10 = tpu.matmul %3, %2, %cst {dimension_numbers = #tpu.dot_dimension_numbers<[1], [0], [0], [1], [0, 0, 1, 1], [], []>} : vector<16x16xbf16>, vector<16x256xbf16>, vector<16x256xf32> -> vector<16x256xf32>
    %11 = vector.broadcast %4 : vector<16x1xf32> to vector<16x256xf32>
    %12 = arith.addf %10, %11 : vector<16x256xf32>
    %cst_16 = arith.constant 0.000000e+00 : f32
    %13 = vector.broadcast %cst_16 : f32 to vector<16x256xf32>
    %14 = arith.maximumf %12, %13 : vector<16x256xf32>
    %c17_i32 = arith.constant 17 : i32
    %15 = tpu.dynamic_rotate %14 by %c17_i32 dim 1 : vector<16x256xf32>, i32 -> vector<16x256xf32>
    %16 = vector.extract_strided_slice %9 {offsets = [0, 0], sizes = [1, 256], strides = [1, 1]} : vector<9x256xf32> to vector<1x256xf32>
    %17 = vector.broadcast %16 : vector<1x256xf32> to vector<16x256xf32>
    %18 = arith.mulf %15, %17 : vector<16x256xf32>
    %19 = arith.truncf %18 : vector<16x256xf32> to vector<16x256xbf16>
    %c16_i32 = arith.constant 16 : i32
    %20 = tpu.dynamic_rotate %14 by %c16_i32 dim 1 : vector<16x256xf32>, i32 -> vector<16x256xf32>
    %21 = vector.extract_strided_slice %9 {offsets = [1, 0], sizes = [1, 256], strides = [1, 1]} : vector<9x256xf32> to vector<1x256xf32>
    %22 = vector.broadcast %21 : vector<1x256xf32> to vector<16x256xf32>
    %23 = arith.mulf %20, %22 : vector<16x256xf32>
    %24 = arith.truncf %23 : vector<16x256xf32> to vector<16x256xbf16>
    %c15_i32 = arith.constant 15 : i32
    %25 = tpu.dynamic_rotate %14 by %c15_i32 dim 1 : vector<16x256xf32>, i32 -> vector<16x256xf32>
    %26 = vector.extract_strided_slice %9 {offsets = [2, 0], sizes = [1, 256], strides = [1, 1]} : vector<9x256xf32> to vector<1x256xf32>
    %27 = vector.broadcast %26 : vector<1x256xf32> to vector<16x256xf32>
    %28 = arith.mulf %25, %27 : vector<16x256xf32>
    %29 = arith.truncf %28 : vector<16x256xf32> to vector<16x256xbf16>
    %c1_i32 = arith.constant 1 : i32
    %30 = tpu.dynamic_rotate %14 by %c1_i32 dim 1 : vector<16x256xf32>, i32 -> vector<16x256xf32>
    %31 = vector.extract_strided_slice %9 {offsets = [3, 0], sizes = [1, 256], strides = [1, 1]} : vector<9x256xf32> to vector<1x256xf32>
    %32 = vector.broadcast %31 : vector<1x256xf32> to vector<16x256xf32>
    %33 = arith.mulf %30, %32 : vector<16x256xf32>
    %34 = arith.truncf %33 : vector<16x256xf32> to vector<16x256xbf16>
    %35 = arith.truncf %14 : vector<16x256xf32> to vector<16x256xbf16>
    %c255_i32 = arith.constant 255 : i32
    %36 = tpu.dynamic_rotate %14 by %c255_i32 dim 1 : vector<16x256xf32>, i32 -> vector<16x256xf32>
    %37 = vector.extract_strided_slice %9 {offsets = [5, 0], sizes = [1, 256], strides = [1, 1]} : vector<9x256xf32> to vector<1x256xf32>
    %38 = vector.broadcast %37 : vector<1x256xf32> to vector<16x256xf32>
    %39 = arith.mulf %36, %38 : vector<16x256xf32>
    %40 = arith.truncf %39 : vector<16x256xf32> to vector<16x256xbf16>
    %c241_i32 = arith.constant 241 : i32
    %41 = tpu.dynamic_rotate %14 by %c241_i32 dim 1 : vector<16x256xf32>, i32 -> vector<16x256xf32>
    %42 = vector.extract_strided_slice %9 {offsets = [6, 0], sizes = [1, 256], strides = [1, 1]} : vector<9x256xf32> to vector<1x256xf32>
    %43 = vector.broadcast %42 : vector<1x256xf32> to vector<16x256xf32>
    %44 = arith.mulf %41, %43 : vector<16x256xf32>
    %45 = arith.truncf %44 : vector<16x256xf32> to vector<16x256xbf16>
    %c240_i32 = arith.constant 240 : i32
    %46 = tpu.dynamic_rotate %14 by %c240_i32 dim 1 : vector<16x256xf32>, i32 -> vector<16x256xf32>
    %47 = vector.extract_strided_slice %9 {offsets = [7, 0], sizes = [1, 256], strides = [1, 1]} : vector<9x256xf32> to vector<1x256xf32>
    %48 = vector.broadcast %47 : vector<1x256xf32> to vector<16x256xf32>
    %49 = arith.mulf %46, %48 : vector<16x256xf32>
    %50 = arith.truncf %49 : vector<16x256xf32> to vector<16x256xbf16>
    %c239_i32 = arith.constant 239 : i32
    %51 = tpu.dynamic_rotate %14 by %c239_i32 dim 1 : vector<16x256xf32>, i32 -> vector<16x256xf32>
    %52 = vector.extract_strided_slice %9 {offsets = [8, 0], sizes = [1, 256], strides = [1, 1]} : vector<9x256xf32> to vector<1x256xf32>
    %53 = vector.broadcast %52 : vector<1x256xf32> to vector<16x256xf32>
    %54 = arith.mulf %51, %53 : vector<16x256xf32>
    %55 = arith.truncf %54 : vector<16x256xf32> to vector<16x256xbf16>
    %56 = tpu.concatenate %19, %24, %29, %34, %35, %40, %45, %50, %55 in 0 : vector<16x256xbf16>, vector<16x256xbf16>, vector<16x256xbf16>, vector<16x256xbf16>, vector<16x256xbf16>, vector<16x256xbf16>, vector<16x256xbf16>, vector<16x256xbf16>, vector<16x256xbf16> -> vector<144x256xbf16>
    %cst_17 = arith.constant dense<0.000000e+00> : vector<16x256xf32>
    %57 = tpu.matmul %5, %56, %cst_17 {dimension_numbers = #tpu.dot_dimension_numbers<[1], [0], [0], [1], [0, 0, 1, 1], [], []>} : vector<16x144xbf16>, vector<144x256xbf16>, vector<16x256xf32> -> vector<16x256xf32>
    %58 = vector.broadcast %6 : vector<16x1xf32> to vector<16x256xf32>
    %59 = arith.addf %57, %58 : vector<16x256xf32>
    %cst_18 = arith.constant 0.000000e+00 : f32
    %60 = vector.broadcast %cst_18 : f32 to vector<16x256xf32>
    %61 = arith.maximumf %59, %60 : vector<16x256xf32>
    %62 = arith.truncf %61 : vector<16x256xf32> to vector<16x256xbf16>
    %cst_19 = arith.constant dense<0.000000e+00> : vector<16x256xf32>
    %63 = tpu.matmul %7, %62, %cst_19 {dimension_numbers = #tpu.dot_dimension_numbers<[1], [0], [0], [1], [0, 0, 1, 1], [], []>} : vector<16x16xbf16>, vector<16x256xbf16>, vector<16x256xf32> -> vector<16x256xf32>
    %64 = vector.broadcast %8 : vector<16x1xf32> to vector<16x256xf32>
    %65 = arith.addf %63, %64 : vector<16x256xf32>
    %66 = arith.addf %65, %1 : vector<16x256xf32>
    %cst_20 = arith.constant 0.000000e+00 : f32
    %67 = vector.broadcast %cst_20 : f32 to vector<16x256xf32>
    %68 = arith.maximumf %66, %67 : vector<16x256xf32>
    %c0_21 = arith.constant 0 : index
    %c0_22 = arith.constant 0 : index
    %c0_23 = arith.constant 0 : index
    %69 = vector.load %arg9[%c0_21, %c0_22, %c0_23] : memref<1x16x256xf32, #tpu.memory_space<vmem>>, vector<1x16x256xf32>
    %70 = vector.shape_cast %69 : vector<1x16x256xf32> to vector<16x256xf32>
    %71 = vector.shape_cast %68 : vector<16x256xf32> to vector<1x16x256xf32>
    tpu.vector_store %arg9[%c0_21, %c0_22, %c0_23], %71 {strides = array<i32>} : memref<1x16x256xf32, #tpu.memory_space<vmem>>, vector<1x16x256xf32>,
    return
  }
  func.func @transform_0(%arg0: i32) -> (i32, i32, i32) {
    %c0_i32 = arith.constant 0 : i32
    %c0_i32_0 = arith.constant 0 : i32
    %c0_i32_1 = arith.constant 0 : i32
    return %arg0, %c0_i32, %c0_i32_0 : i32, i32, i32
  }
  func.func @transform_1(%arg0: i32) -> (i32, i32) {
    %c0_i32 = arith.constant 0 : i32
    %c0_i32_0 = arith.constant 0 : i32
    %c0_i32_1 = arith.constant 0 : i32
    return %c0_i32, %c0_i32_0 : i32, i32
  }
  func.func @transform_2(%arg0: i32) -> (i32, i32) {
    %c0_i32 = arith.constant 0 : i32
    %c0_i32_0 = arith.constant 0 : i32
    %c0_i32_1 = arith.constant 0 : i32
    return %c0_i32, %c0_i32_0 : i32, i32
  }
  func.func @transform_3(%arg0: i32) -> (i32, i32) {
    %c0_i32 = arith.constant 0 : i32
    %c0_i32_0 = arith.constant 0 : i32
    %c0_i32_1 = arith.constant 0 : i32
    return %c0_i32, %c0_i32_0 : i32, i32
  }
  func.func @transform_4(%arg0: i32) -> (i32, i32) {
    %c0_i32 = arith.constant 0 : i32
    %c0_i32_0 = arith.constant 0 : i32
    %c0_i32_1 = arith.constant 0 : i32
    return %c0_i32, %c0_i32_0 : i32, i32
  }
  func.func @transform_5(%arg0: i32) -> (i32, i32) {
    %c0_i32 = arith.constant 0 : i32
    %c0_i32_0 = arith.constant 0 : i32
    %c0_i32_1 = arith.constant 0 : i32
    return %c0_i32, %c0_i32_0 : i32, i32
  }
  func.func @transform_6(%arg0: i32) -> (i32, i32) {
    %c0_i32 = arith.constant 0 : i32
    %c0_i32_0 = arith.constant 0 : i32
    %c0_i32_1 = arith.constant 0 : i32
    return %c0_i32, %c0_i32_0 : i32, i32
  }
  func.func @transform_7(%arg0: i32) -> (i32, i32) {
    %c0_i32 = arith.constant 0 : i32
    %c0_i32_0 = arith.constant 0 : i32
    %c0_i32_1 = arith.constant 0 : i32
    return %c0_i32, %c0_i32_0 : i32, i32
  }
  func.func @transform_8(%arg0: i32) -> (i32, i32, i32) {
    %c0_i32 = arith.constant 0 : i32
    %c0_i32_0 = arith.constant 0 : i32
    %c0_i32_1 = arith.constant 0 : i32
    return %arg0, %c0_i32, %c0_i32_0 : i32, i32, i32
  }
}

</mosaic_0001>

<llo_original>
// kernel: tpu_custom_call.1
$region0: #{tpu_custom_call.1}
  #allocation0 [shape = 'u32[]', space=smem, size = 0x4, offset = 0x4, fixed_abs, tag = 'smem constant byte address 0x4 - core index']
  #allocation1 [shape = 'u32[144,128]{1,0:T(1,128)}', space=vmem, size = 0x12000, scoped, tag = 'internal scratch']
  %s0 = inlined_call_operand.hbm [shape: f32[2,16,256], index: 0, kind: input, shape index: {}]
  %s1 = inlined_call_operand.vmem [shape: f32[9,256], index: 1, kind: input, shape index: {}]
  %s2 = inlined_call_operand.vmem [shape: bf16[16,16], index: 2, kind: input, shape index: {}]
  %s3 = inlined_call_operand.vmem [shape: f32[16,1], index: 3, kind: input, shape index: {}]
  %s4 = inlined_call_operand.vmem [shape: bf16[16,144], index: 4, kind: input, shape index: {}]
  %s5 = inlined_call_operand.vmem [shape: f32[16,1], index: 5, kind: input, shape index: {}]
  %s6 = inlined_call_operand.vmem [shape: bf16[16,16], index: 6, kind: input, shape index: {}]
  %s7 = inlined_call_operand.vmem [shape: f32[16,1], index: 7, kind: input, shape index: {}]
  %s8 = inlined_call_operand.hbm [shape: f32[2,16,256], index: 8, kind: output, shape index: {}]
  %s9 = sld [smem:[#allocation0]]
  $region69: #{tpu_custom_call.1} parent=0
    _
  %s11 = ssub.s32 1, %s9
  %s12 = scalar_select 0, %s11, %s9
  $region1: #{tpu_custom_call.1} parent=0
    #allocation2 [shape = 'u8[32768]{0}', space=vmem, size = 0x8000, scoped, tag = 'input window, operand 0']
    #allocation3 [shape = 's32[2]{0}', space=sflag, size = 0x8, scoped, tag = 'scoped memory for tpu_custom_call.1']
    #allocation4 [shape = 's32[2]{0}', space=sflag, size = 0x8, scoped, tag = 'scoped memory for tpu_custom_call.1']
    #allocation5 [shape = 'u8[32768]{0}', space=vmem, size = 0x8000, scoped, tag = 'output window, operand 0']
    %13 = vsyncpa [#allocation3], 0
    %s14 = scalar_lea.sflag [#allocation3], 1
    %15 = vsyncpa %s14, 0
    %16 = vsyncpa [#allocation4], 0
    %s17 = scalar_lea.sflag [#allocation4], 1
    %18 = vsyncpa %s17, 0
    loop: start=0, step=1, limit=4
    $region2: #{tpu_custom_call.1} parent=1 // loop_pre_header
      _
    $region3: #{tpu_custom_call.1} parent=1 // loop_header
      %s20 = sphi 0, %s24
      %p21 = scmp.ge.s32.totalorder %s20, 4
      %s30 = sphi 0, %s32
      %s33 = sphi 0, %s30
      %s34 = sphi 0, %s33
      %s50 = sphi 0, %s34
      %s54 = sphi 0, %s54
      %s56 = sphi 0, %s54
      %s57 = sphi 0, %s56
      %s71 = sphi 0, %s57
      %s75 = sphi 0, %s75
      %s77 = sphi 0, %s75
      %s78 = sphi 0, %s77
      %s92 = sphi 0, %s78
      %s96 = sphi 0, %s96
      %s98 = sphi 0, %s96
      %s99 = sphi 0, %s98
      %s113 = sphi 0, %s99
      %s117 = sphi 0, %s117
      %s119 = sphi 0, %s117
      %s120 = sphi 0, %s119
      %s134 = sphi 0, %s120
      %s138 = sphi 0, %s138
      %s140 = sphi 0, %s138
      %s141 = sphi 0, %s140
      %s155 = sphi 0, %s141
      %s159 = sphi 0, %s159
      %s161 = sphi 0, %s159
      %s162 = sphi 0, %s161
      %s176 = sphi 0, %s162
      %s180 = sphi 0, %s180
      %s182 = sphi 0, %s180
      %s183 = sphi 0, %s182
      %s197 = sphi 0, %s183
      %s203 = sphi 0, %s205
      %s206 = sphi 0, %s203
      %s207 = sphi 0, %s206
      %s223 = sphi 0, %s207
    $region4: #{tpu_custom_call.1} parent=1 // loop_header_branch
      %23 = sbr.rel (%p21) target = $region8
    $region5: #{tpu_custom_call.1} parent=1 // loop_body
      %s25 = ssub.s32 %s20, 1
      %s26 = ssub.s32 %s20, 2
      %s27 = sadd.s32 %s20, 1
      %s28 = ssub.s32 %s20, %s27
      %p29 = scmp.eq.s32.totalorder %s28, 0
      %s31 = sadd.s32 %s30, 1
      %s32 = scalar_select %p29, %s30, %s31
      %p35 = pneg %p29
      %p36 = scmp.eq.s32.totalorder %s20, 1
      %p37 = por %p35, %p36
      %p38 = scmp.ne.s32.totalorder %s30, %s33
      %p39 = scmp.eq.s32.totalorder %s20, 0
      %p40 = por %p38, %p39
      %p41 = scmp.ne.s32.totalorder %s30, %s33
      %p42 = scmp.eq.s32.totalorder %s25, 1
      %p43 = por %p41, %p42
      %p44 = scmp.ne.s32.totalorder %s33, %s34
      %p45 = scmp.eq.s32.totalorder %s25, 0
      %p46 = por %p44, %p45
      %p47 = scmp.ne.s32.totalorder %s33, %s34
      %p48 = scmp.eq.s32.totalorder %s26, 1
      %p49 = por %p47, %p48
      %p51 = scmp.ne.s32.totalorder %s34, %s50
      %p52 = scmp.eq.s32.totalorder %s26, 0
      %p53 = por %p51, %p52
      %s55 = sadd.s32 %s54, 1
      %p58 = scmp.eq.s32.totalorder %s20, 1
      %p59 = scmp.ne.s32.totalorder %s54, %s56
      %p60 = scmp.eq.s32.totalorder %s20, 0
      %p61 = por %p59, %p60
      %p62 = scmp.ne.s32.totalorder %s54, %s56
      %p63 = scmp.eq.s32.totalorder %s25, 1
      %p64 = por %p62, %p63
      %p65 = scmp.ne.s32.totalorder %s56, %s57
      %p66 = scmp.eq.s32.totalorder %s25, 0
      %p67 = por %p65, %p66
      %p68 = scmp.ne.s32.totalorder %s56, %s57
      %p69 = scmp.eq.s32.totalorder %s26, 1
      %p70 = por %p68, %p69
      %p72 = scmp.ne.s32.totalorder %s57, %s71
      %p73 = scmp.eq.s32.totalorder %s26, 0
      %p74 = por %p72, %p73
      %s76 = sadd.s32 %s75, 1
      %p79 = scmp.eq.s32.totalorder %s20, 1
      %p80 = scmp.ne.s32.totalorder %s75, %s77
      %p81 = scmp.eq.s32.totalorder %s20, 0
      %p82 = por %p80, %p81
      %p83 = scmp.ne.s32.totalorder %s75, %s77
      %p84 = scmp.eq.s32.totalorder %s25, 1
      %p85 = por %p83, %p84
      %p86 = scmp.ne.s32.totalorder %s77, %s78
      %p87 = scmp.eq.s32.totalorder %s25, 0
      %p88 = por %p86, %p87
      %p89 = scmp.ne.s32.totalorder %s77, %s78
      %p90 = scmp.eq.s32.totalorder %s26, 1
      %p91 = por %p89, %p90
      %p93 = scmp.ne.s32.totalorder %s78, %s92
      %p94 = scmp.eq.s32.totalorder %s26, 0
      %p95 = por %p93, %p94
      %s97 = sadd.s32 %s96, 1
      %p100 = scmp.eq.s32.totalorder %s20, 1
      %p101 = scmp.ne.s32.totalorder %s96, %s98
      %p102 = scmp.eq.s32.totalorder %s20, 0
      %p103 = por %p101, %p102
      %p104 = scmp.ne.s32.totalorder %s96, %s98
      %p105 = scmp.eq.s32.totalorder %s25, 1
      %p106 = por %p104, %p105
      %p107 = scmp.ne.s32.totalorder %s98, %s99
      %p108 = scmp.eq.s32.totalorder %s25, 0
      %p109 = por %p107, %p108
      %p110 = scmp.ne.s32.totalorder %s98, %s99
      %p111 = scmp.eq.s32.totalorder %s26, 1
      %p112 = por %p110, %p111
      %p114 = scmp.ne.s32.totalorder %s99, %s113
      %p115 = scmp.eq.s32.totalorder %s26, 0
      %p116 = por %p114, %p115
      %s118 = sadd.s32 %s117, 1
      %p121 = scmp.eq.s32.totalorder %s20, 1
      %p122 = scmp.ne.s32.totalorder %s117, %s119
      %p123 = scmp.eq.s32.totalorder %s20, 0
      %p124 = por %p122, %p123
      %p125 = scmp.ne.s32.totalorder %s117, %s119
      %p126 = scmp.eq.s32.totalorder %s25, 1
      %p127 = por %p125, %p126
      %p128 = scmp.ne.s32.totalorder %s119, %s120
      %p129 = scmp.eq.s32.totalorder %s25, 0
      %p130 = por %p128, %p129
      %p131 = scmp.ne.s32.totalorder %s119, %s120
      %p132 = scmp.eq.s32.totalorder %s26, 1
      %p133 = por %p131, %p132
      %p135 = scmp.ne.s32.totalorder %s120, %s134
      %p136 = scmp.eq.s32.totalorder %s26, 0
      %p137 = por %p135, %p136
      %s139 = sadd.s32 %s138, 1
      %p142 = scmp.eq.s32.totalorder %s20, 1
      %p143 = scmp.ne.s32.totalorder %s138, %s140
      %p144 = scmp.eq.s32.totalorder %s20, 0
      %p145 = por %p143, %p144
      %p146 = scmp.ne.s32.totalorder %s138, %s140
      %p147 = scmp.eq.s32.totalorder %s25, 1
      %p148 = por %p146, %p147
      %p149 = scmp.ne.s32.totalorder %s140, %s141
      %p150 = scmp.eq.s32.totalorder %s25, 0
      %p151 = por %p149, %p150
      %p152 = scmp.ne.s32.totalorder %s140, %s141
      %p153 = scmp.eq.s32.totalorder %s26, 1
      %p154 = por %p152, %p153
      %p156 = scmp.ne.s32.totalorder %s141, %s155
      %p157 = scmp.eq.s32.totalorder %s26, 0
      %p158 = por %p156, %p157
      %s160 = sadd.s32 %s159, 1
      %p163 = scmp.eq.s32.totalorder %s20, 1
      %p164 = scmp.ne.s32.totalorder %s159, %s161
      %p165 = scmp.eq.s32.totalorder %s20, 0
      %p166 = por %p164, %p165
      %p167 = scmp.ne.s32.totalorder %s159, %s161
      %p168 = scmp.eq.s32.totalorder %s25, 1
      %p169 = por %p167, %p168
      %p170 = scmp.ne.s32.totalorder %s161, %s162
      %p171 = scmp.eq.s32.totalorder %s25, 0
      %p172 = por %p170, %p171
      %p173 = scmp.ne.s32.totalorder %s161, %s162
      %p174 = scmp.eq.s32.totalorder %s26, 1
      %p175 = por %p173, %p174
      %p177 = scmp.ne.s32.totalorder %s162, %s176
      %p178 = scmp.eq.s32.totalorder %s26, 0
      %p179 = por %p177, %p178
      %s181 = sadd.s32 %s180, 1
      %p184 = scmp.eq.s32.totalorder %s20, 1
      %p185 = scmp.ne.s32.totalorder %s180, %s182
      %p186 = scmp.eq.s32.totalorder %s20, 0
      %p187 = por %p185, %p186
      %p188 = scmp.ne.s32.totalorder %s180, %s182
      %p189 = scmp.eq.s32.totalorder %s25, 1
      %p190 = por %p188, %p189
      %p191 = scmp.ne.s32.totalorder %s182, %s183
      %p192 = scmp.eq.s32.totalorder %s25, 0
      %p193 = por %p191, %p192
      %p194 = scmp.ne.s32.totalorder %s182, %s183
      %p195 = scmp.eq.s32.totalorder %s26, 1
      %p196 = por %p194, %p195
      %p198 = scmp.ne.s32.totalorder %s183, %s197
      %p199 = scmp.eq.s32.totalorder %s26, 0
      %p200 = por %p198, %p199
      %s201 = ssub.s32 %s20, %s27
      %p202 = scmp.eq.s32.totalorder %s201, 0
      %s204 = sadd.s32 %s203, 1
      %s205 = scalar_select %p202, %s203, %s204
      %p208 = pneg %p202
      %p209 = scmp.eq.s32.totalorder %s20, 1
      %p210 = por %p208, %p209
      %p211 = scmp.ne.s32.totalorder %s203, %s206
      %p212 = scmp.eq.s32.totalorder %s20, 0
      %p213 = por %p211, %p212
      %p214 = scmp.ne.s32.totalorder %s203, %s206
      %p215 = scmp.eq.s32.totalorder %s25, 1
      %p216 = por %p214, %p215
      %p217 = scmp.ne.s32.totalorder %s206, %s207
      %p218 = scmp.eq.s32.totalorder %s25, 0
      %p219 = por %p217, %p218
      %p220 = scmp.ne.s32.totalorder %s206, %s207
      %p221 = scmp.eq.s32.totalorder %s26, 1
      %p222 = por %p220, %p221
      %p224 = scmp.ne.s32.totalorder %s207, %s223
      %p225 = scmp.eq.s32.totalorder %s26, 0
      %p226 = por %p224, %p225
      %p227 = scmp.le.s32.totalorder 1, %s20
      %p228 = scmp.lt.s32.totalorder %s20, 3
      %p229 = pnand %p227, %p228
      %p230 = pneg %p229
      // Predicated region
      $region9: #{tpu_custom_call.1} parent=5 // pred_check
        _
      $region10: #{tpu_custom_call.1} parent=5 // pred_check_branch
        %232 = sbr.rel (%p229) target = $region12
      $region11: #{tpu_custom_call.1} parent=5 // pred_region
        %s233 = ssub.s32 %s20, 1
        // Predicated region
        $region13: #{tpu_custom_call.1} parent=11 // pred_check
          %p234 = pneg %p67
        $region14: #{tpu_custom_call.1} parent=11 // pred_check_branch
          %236 = sbr.rel (%p234) target = $region16
        $region15: #{tpu_custom_call.1} parent=11 // pred_region
          _
        $region16: #{tpu_custom_call.1} parent=11 // pred_fallthru
          _
        // Predicated region
        $region17: #{tpu_custom_call.1} parent=11 // pred_check
          %p237 = pneg %p88
        $region18: #{tpu_custom_call.1} parent=11 // pred_check_branch
          %239 = sbr.rel (%p237) target = $region20
        $region19: #{tpu_custom_call.1} parent=11 // pred_region
          _
        $region20: #{tpu_custom_call.1} parent=11 // pred_fallthru
          _
        // Predicated region
        $region21: #{tpu_custom_call.1} parent=11 // pred_check
          %p240 = pneg %p109
        $region22: #{tpu_custom_call.1} parent=11 // pred_check_branch
          %242 = sbr.rel (%p240) target = $region24
        $region23: #{tpu_custom_call.1} parent=11 // pred_region
          _
        $region24: #{tpu_custom_call.1} parent=11 // pred_fallthru
          _
        // Predicated region
        $region25: #{tpu_custom_call.1} parent=11 // pred_check
          %p243 = pneg %p130
        $region26: #{tpu_custom_call.1} parent=11 // pred_check_branch
          %245 = sbr.rel (%p243) target = $region28
        $region27: #{tpu_custom_call.1} parent=11 // pred_region
          _
        $region28: #{tpu_custom_call.1} parent=11 // pred_fallthru
          _
        // Predicated region
        $region29: #{tpu_custom_call.1} parent=11 // pred_check
          %p246 = pneg %p151
        $region30: #{tpu_custom_call.1} parent=11 // pred_check_branch
          %248 = sbr.rel (%p246) target = $region32
        $region31: #{tpu_custom_call.1} parent=11 // pred_region
          _
        $region32: #{tpu_custom_call.1} parent=11 // pred_fallthru
          _
        // Predicated region
        $region33: #{tpu_custom_call.1} parent=11 // pred_check
          %p249 = pneg %p172
        $region34: #{tpu_custom_call.1} parent=11 // pred_check_branch
          %251 = sbr.rel (%p249) target = $region36
        $region35: #{tpu_custom_call.1} parent=11 // pred_region
          _
        $region36: #{tpu_custom_call.1} parent=11 // pred_fallthru
          _
        // Predicated region
        $region37: #{tpu_custom_call.1} parent=11 // pred_check
          %p252 = pneg %p193
        $region38: #{tpu_custom_call.1} parent=11 // pred_check_branch
          %254 = sbr.rel (%p252) target = $region40
        $region39: #{tpu_custom_call.1} parent=11 // pred_region
          _
        $region40: #{tpu_custom_call.1} parent=11 // pred_fallthru
          _
      $region12: #{tpu_custom_call.1} parent=5 // pred_fallthru
        _
      %p255 = scmp.lt.s32.totalorder %s20, 2
      // Predicated region
      $region41: #{tpu_custom_call.1} parent=5 // pred_check
        %p256 = pneg %p255
      $region42: #{tpu_custom_call.1} parent=5 // pred_check_branch
        %258 = sbr.rel (%p256) target = $region44
      $region43: #{tpu_custom_call.1} parent=5 // pred_region
        // Predicated region
        $region45: #{tpu_custom_call.1} parent=43 // pred_check
          %p259 = pneg %p40
        $region46: #{tpu_custom_call.1} parent=43 // pred_check_branch
          %261 = sbr.rel (%p259) target = $region48
        $region47: #{tpu_custom_call.1} parent=43 // pred_region
          %s262 = sand.u32 %s30, 1
          %s263 = scalar_lea.sflag [#allocation3], %s262
          %s264 = sand.u32 %s30, 1
          %s265 = smul.addr %s264, 32
          %s266 = scalar_lea.vmem [#allocation2], %s265
          %s268 = ssub.s32 512, 512
          %269 = vsyncadd %s263, %s268
          %s270 = smul.addr %s20, 4
          %s271 = smul.addr %s270, 128
          %s272 = scalar_lea.hbm %s0, %s271
          %s273 = sshll.u32 %s266, 4
          %s274 = int_to_ptr.vmem [resolvable:$true] %s273
          %279 = dma.hbm_to_vmem [thread:$0]  %s272, 512, %s274, %s263, 256, 256, 16
        $region48: #{tpu_custom_call.1} parent=43 // pred_fallthru
          _
      $region44: #{tpu_custom_call.1} parent=5 // pred_fallthru
        _
      %p280 = scmp.le.s32.totalorder 1, %s20
      %p281 = scmp.lt.s32.totalorder %s20, 3
      %p282 = pnand %p280, %p281
      %p283 = pneg %p282
      // Predicated region
      $region49: #{tpu_custom_call.1} parent=5 // pred_check
        _
      $region50: #{tpu_custom_call.1} parent=5 // pred_check_branch
        %285 = sbr.rel (%p282) target = $region52
      $region51: #{tpu_custom_call.1} parent=5 // pred_region
        %s286 = ssub.s32 %s20, 1
        %s287 = sand.u32 %s33, 1
        %s288 = scalar_lea.sflag [#allocation3], %s287
        %s289 = sand.u32 %s33, 1
        %s290 = smul.addr %s289, 32
        %s291 = scalar_lea.vmem [#allocation2], %s290
        // Predicated region
        $region53: #{tpu_custom_call.1} parent=51 // pred_check
          %p292 = pneg %p46
        $region54: #{tpu_custom_call.1} parent=51 // pred_check_branch
          %294 = sbr.rel (%p292) target = $region56
        $region55: #{tpu_custom_call.1} parent=51 // pred_region
          %295 = dma.done %s288, 512
        $region56: #{tpu_custom_call.1} parent=51 // pred_fallthru
          _
        %s296 = sand.u32 %s33, 1
        %s297 = scalar_lea.sflag [#allocation3], %s296
        %s298 = sand.u32 %s33, 1
        %s299 = smul.addr %s298, 32
        %s300 = scalar_lea.vmem [#allocation2], %s299
        %p301 = pneg %p46
        %p302 = pneg %p43
        %p303 = pneg %p67
        %p304 = pneg %p64
        %p305 = pneg %p88
        %p306 = pneg %p85
        %p307 = pneg %p109
        %p308 = pneg %p106
        %p309 = pneg %p130
        %p310 = pneg %p127
        %p311 = pneg %p151
        %p312 = pneg %p148
        %p313 = pneg %p172
        %p314 = pneg %p169
        %p315 = pneg %p193
        %p316 = pneg %p190
        %p317 = pneg %p219
        %p318 = pneg %p216
        %s319 = sand.u32 %s206, 1
        %s320 = scalar_lea.sflag [#allocation4], %s319
        %s321 = sand.u32 %s206, 1
        %s322 = smul.addr %s321, 32
        %s323 = scalar_lea.vmem [#allocation5], %s322
        %v325 = vld [vmem:[%s291] sm:$0xff]
        %v326 = vld [vmem:[%s291 + $0x8] sm:$0xff]
        %v327 = vld [vmem:[%s291 + $0x10] sm:$0xff]
        %v328 = vld [vmem:[%s291 + $0x18] sm:$0xff]
        %v329 = vpack.c.bf16 %v327, %v325
        %v330 = vpack.c.bf16 %v328, %v326
        %v331 = vld [vmem:[%s2] sm:$0xf]
        %v332 = vld [vmem:[%s2 + $0x4] sm:$0xf]
        %v333 = vld [vmem:[%s3] sm:$0xff]
        %v334 = vld [vmem:[%s3 + $0x8] sm:$0xff]
        %v335 = vld [vmem:[%s4] sm:$0xff]
        %v336 = vld [vmem:[%s4 + $0x8] sm:$0xff]
        %v337 = vld [vmem:[%s5] sm:$0xff]
        %v338 = vld [vmem:[%s5 + $0x8] sm:$0xff]
        %v339 = vld [vmem:[%s6] sm:$0xf]
        %v340 = vld [vmem:[%s6 + $0x4] sm:$0xf]
        %v341 = vld [vmem:[%s7] sm:$0xff]
        %v342 = vld [vmem:[%s7 + $0x8] sm:$0xff]
        %v343 = vld [vmem:[%s1] sm:$0xff]
        %v344 = vld [vmem:[%s1 + $0x8] sm:$0xff]
        %v345 = vld [vmem:[%s1 + $0x10] sm:$0x1]
        %v346 = vld [vmem:[%s1 + $0x18] sm:$0x1]
        %348 = vset.pattern.permute.xlu0 0
        %349 = vperm.xlu0 %348, %v333
        %v350 = vpop.permute.xlu0 %349
        %353 = vset.pattern.permute.xlu0 0
        %354 = vperm.xlu0 %353, %v334
        %v355 = vpop.permute.xlu0 %354
        %v359 = vunpack.c.l.b16 %v331
        %v360 = vunpack.c.l.b16 %v332
        %v361 = vpack.c.b16 %v360, %v359
        %vm362 = vcmask 130048
        %v364 = vsel %vm362, %v361, 0
        %366 = vmatprep.subr.bf16.mxu0 %v330
        %367 = vmatpush1.bf16.msra.mxu0 %v329
        %368 = vmatprep.subr.bf16.mxu0 0
        %369 = vmatpush1.bf16.msra.mxu0 0
        %370 = vmatprep.subr.bf16.mxu0 0
        %371 = vmatpush1.bf16.msra.mxu0 0
        %372 = vmatprep.subr.bf16.mxu0 0
        %373 = vmatpush1.bf16.msra.mxu0 0
        %374 = vmatprep.subr.bf16.mxu0 0
        %375 = vmatpush1.bf16.msra.mxu0 0
        %376 = vmatprep.subr.bf16.mxu0 0
        %377 = vmatpush1.bf16.msra.mxu0 0
        %378 = vmatprep.subr.bf16.mxu0 0
        %379 = vmatpush1.bf16.msra.mxu0 0
        %380 = vmatprep.subr.bf16.mxu0 0
        %381 = vmatpush1.bf16.msra.mxu0 0
        %382 = vmatprep.subr.bf16.mxu0 0
        %383 = vmatpush1.bf16.msra.mxu0 0
        %384 = vmatprep.subr.bf16.mxu0 0
        %385 = vmatpush1.bf16.msra.mxu0 0
        %386 = vmatprep.subr.bf16.mxu0 0
        %387 = vmatpush1.bf16.msra.mxu0 0
        %388 = vmatprep.subr.bf16.mxu0 0
        %389 = vmatpush1.bf16.msra.mxu0 0
        %390 = vmatprep.subr.bf16.mxu0 0
        %391 = vmatpush1.bf16.msra.mxu0 0
        %392 = vmatprep.subr.bf16.mxu0 0
        %393 = vmatpush1.bf16.msra.mxu0 0
        %394 = vmatprep.subr.bf16.mxu0 0
        %395 = vmatpush1.bf16.msra.mxu0 0
        %396 = vmatprep.subr.bf16.mxu0 0
        %397 = vmatpush1.bf16.msra.mxu0 0
        %398 = vmatprep.mubr.bf16.mxu0 0
        %399 = vmatmul.mubr.bf16.gmra.mrb[0].mxu0 %v364
        %v400 = vpop.f32.mrb[0].mxu0
        %v401 = vadd.f32 %v350, %v400
        %v402 = vpop.f32.mrb[0].mxu0
        %v403 = vadd.f32 %v350, %v402
        %v404 = vpop.f32.mrb[0].mxu0
        %v405 = vadd.f32 %v355, %v404
        %v406 = vpop.f32.mrb[0].mxu0
        %v407 = vadd.f32 %v355, %v406
        %408 = vdwg.mxu0
        %v409 = vmax.f32 %v401, 0.0
        %v410 = vmax.f32 %v403, 0.0
        %v411 = vmax.f32 %v405, 0.0
        %v412 = vmax.f32 %v407, 0.0
        %413 = vrot.lane.b32.xlu0 %v409, 17
        %v414 = vpop.permute.xlu0 %413
        %415 = vrot.lane.b32.xlu0 %v411, 17
        %v416 = vpop.permute.xlu0 %415
        %417 = vrot.lane.b32.xlu0 %v410, 17
        %v418 = vpop.permute.xlu0 %417
        %419 = vrot.lane.b32.xlu0 %v412, 17
        %v420 = vpop.permute.xlu0 %419
        %v421 = vlaneseq
        %v422 = vand.u32 %v421, 127
        %vm423 = vcmp.lt.s32.totalorder %v422, 17
        %v424 = vsel %vm423, %v414, %v418
        %v425 = vsel %vm423, %v416, %v420
        %v426 = vsel %vm423, %v418, %v414
        %v427 = vsel %vm423, %v420, %v416
        %v428 = vlaneseq
        %v429 = vshrl.u32 %v428, 7
        %v430 = vsub.s32 0, %v429
        %v431 = vrot.slane %v343, %v430
        %v432 = vlaneseq
        %v433 = vshrl.u32 %v432, 7
        %v434 = vsub.s32 0, %v433
        %v435 = vrot.slane %v344, %v434
        %v436 = vmul.f32 %v426, %v431
        %v437 = vmul.f32 %v424, %v435
        %v438 = vmul.f32 %v427, %v431
        %v439 = vmul.f32 %v425, %v435
        %v440 = vpack.c.bf16 %v438, %v436
        %v441 = vpack.c.bf16 %v439, %v437
        %442 = vrot.lane.b32.xlu0 %v409, 16
        %v443 = vpop.permute.xlu0 %442
        %444 = vrot.lane.b32.xlu0 %v411, 16
        %v445 = vpop.permute.xlu0 %444
        %446 = vrot.lane.b32.xlu0 %v410, 16
        %v447 = vpop.permute.xlu0 %446
        %448 = vrot.lane.b32.xlu0 %v412, 16
        %v449 = vpop.permute.xlu0 %448
        %vm450 = vcmp.lt.s32.totalorder %v422, 16
        %v451 = vsel %vm450, %v443, %v447
        %v452 = vsel %vm450, %v445, %v449
        %v453 = vsel %vm450, %v447, %v443
        %v454 = vsel %vm450, %v449, %v445
        %v455 = vlaneseq
        %v456 = vshrl.u32 %v455, 7
        %v457 = vsub.s32 1, %v456
        %v458 = vrot.slane %v343, %v457
        %v459 = vlaneseq
        %v460 = vshrl.u32 %v459, 7
        %v461 = vsub.s32 1, %v460
        %v462 = vrot.slane %v344, %v461
        %v463 = vmul.f32 %v453, %v458
        %v464 = vmul.f32 %v451, %v462
        %v465 = vmul.f32 %v454, %v458
        %v466 = vmul.f32 %v452, %v462
        %v467 = vpack.c.bf16 %v465, %v463
        %v468 = vpack.c.bf16 %v466, %v464
        %469 = vrot.lane.b32.xlu0 %v409, 15
        %v470 = vpop.permute.xlu0 %469
        %471 = vrot.lane.b32.xlu0 %v411, 15
        %v472 = vpop.permute.xlu0 %471
        %473 = vrot.lane.b32.xlu0 %v410, 15
        %v474 = vpop.permute.xlu0 %473
        %475 = vrot.lane.b32.xlu0 %v412, 15
        %v476 = vpop.permute.xlu0 %475
        %vm477 = vcmp.lt.s32.totalorder %v422, 15
        %v478 = vsel %vm477, %v470, %v474
        %v479 = vsel %vm477, %v472, %v476
        %v480 = vsel %vm477, %v474, %v470
        %v481 = vsel %vm477, %v476, %v472
        %v482 = vlaneseq
        %v483 = vshrl.u32 %v482, 7
        %v484 = vsub.s32 2, %v483
        %v485 = vrot.slane %v343, %v484
        %v486 = vlaneseq
        %v487 = vshrl.u32 %v486, 7
        %v488 = vsub.s32 2, %v487
        %v489 = vrot.slane %v344, %v488
        %v490 = vmul.f32 %v480, %v485
        %v491 = vmul.f32 %v478, %v489
        %v492 = vmul.f32 %v481, %v485
        %v493 = vmul.f32 %v479, %v489
        %v494 = vpack.c.bf16 %v492, %v490
        %v495 = vpack.c.bf16 %v493, %v491
        %496 = vrot.lane.b32.xlu0 %v409, 1
        %v497 = vpop.permute.xlu0 %496
        %498 = vrot.lane.b32.xlu0 %v411, 1
        %v499 = vpop.permute.xlu0 %498
        %500 = vrot.lane.b32.xlu0 %v410, 1
        %v501 = vpop.permute.xlu0 %500
        %502 = vrot.lane.b32.xlu0 %v412, 1
        %v503 = vpop.permute.xlu0 %502
        %vm504 = vcmp.lt.s32.totalorder %v422, 1
        %v505 = vsel %vm504, %v497, %v501
        %v506 = vsel %vm504, %v499, %v503
        %v507 = vsel %vm504, %v501, %v497
        %v508 = vsel %vm504, %v503, %v499
        %v509 = vlaneseq
        %v510 = vshrl.u32 %v509, 7
        %v511 = vsub.s32 3, %v510
        %v512 = vrot.slane %v343, %v511
        %v513 = vlaneseq
        %v514 = vshrl.u32 %v513, 7
        %v515 = vsub.s32 3, %v514
        %v516 = vrot.slane %v344, %v515
        %v517 = vmul.f32 %v507, %v512
        %v518 = vmul.f32 %v505, %v516
        %v519 = vmul.f32 %v508, %v512
        %v520 = vmul.f32 %v506, %v516
        %v521 = vpack.c.bf16 %v519, %v517
        %v522 = vpack.c.bf16 %v520, %v518
        %v523 = vpack.c.bf16 %v411, %v409
        %v524 = vpack.c.bf16 %v412, %v410
        %525 = vrot.lane.b32.xlu0 %v409, 127
        %v526 = vpop.permute.xlu0 %525
        %527 = vrot.lane.b32.xlu0 %v411, 127
        %v528 = vpop.permute.xlu0 %527
        %529 = vrot.lane.b32.xlu0 %v410, 127
        %v530 = vpop.permute.xlu0 %529
        %531 = vrot.lane.b32.xlu0 %v412, 127
        %v532 = vpop.permute.xlu0 %531
        %vm533 = vcmp.lt.s32.totalorder %v422, 127
        %v534 = vsel %vm533, %v526, %v530
        %v535 = vsel %vm533, %v528, %v532
        %v536 = vsel %vm533, %v530, %v526
        %v537 = vsel %vm533, %v532, %v528
        %v538 = vlaneseq
        %v539 = vshrl.u32 %v538, 7
        %v540 = vsub.s32 5, %v539
        %v541 = vrot.slane %v343, %v540
        %v542 = vlaneseq
        %v543 = vshrl.u32 %v542, 7
        %v544 = vsub.s32 5, %v543
        %v545 = vrot.slane %v344, %v544
        %v546 = vmul.f32 %v534, %v541
        %v547 = vmul.f32 %v536, %v545
        %v548 = vmul.f32 %v535, %v541
        %v549 = vmul.f32 %v537, %v545
        %v550 = vpack.c.bf16 %v548, %v546
        %v551 = vpack.c.bf16 %v549, %v547
        %552 = vrot.lane.b32.xlu0 %v409, 113
        %v553 = vpop.permute.xlu0 %552
        %554 = vrot.lane.b32.xlu0 %v411, 113
        %v555 = vpop.permute.xlu0 %554
        %556 = vrot.lane.b32.xlu0 %v410, 113
        %v557 = vpop.permute.xlu0 %556
        %558 = vrot.lane.b32.xlu0 %v412, 113
        %v559 = vpop.permute.xlu0 %558
        %vm560 = vcmp.lt.s32.totalorder %v422, 113
        %v561 = vsel %vm560, %v553, %v557
        %v562 = vsel %vm560, %v555, %v559
        %v563 = vsel %vm560, %v557, %v553
        %v564 = vsel %vm560, %v559, %v555
        %v565 = vlaneseq
        %v566 = vshrl.u32 %v565, 7
        %v567 = vsub.s32 6, %v566
        %v568 = vrot.slane %v343, %v567
        %v569 = vlaneseq
        %v570 = vshrl.u32 %v569, 7
        %v571 = vsub.s32 6, %v570
        %v572 = vrot.slane %v344, %v571
        %v573 = vmul.f32 %v561, %v568
        %v574 = vmul.f32 %v563, %v572
        %v575 = vmul.f32 %v562, %v568
        %v576 = vmul.f32 %v564, %v572
        %v577 = vpack.c.bf16 %v575, %v573
        %v578 = vpack.c.bf16 %v576, %v574
        %579 = vrot.lane.b32.xlu0 %v409, 112
        %v580 = vpop.permute.xlu0 %579
        %581 = vrot.lane.b32.xlu0 %v411, 112
        %v582 = vpop.permute.xlu0 %581
        %583 = vrot.lane.b32.xlu0 %v410, 112
        %v584 = vpop.permute.xlu0 %583
        %585 = vrot.lane.b32.xlu0 %v412, 112
        %v586 = vpop.permute.xlu0 %585
        %vm587 = vcmp.lt.s32.totalorder %v422, 112
        %v588 = vsel %vm587, %v580, %v584
        %v589 = vsel %vm587, %v582, %v586
        %v590 = vsel %vm587, %v584, %v580
        %v591 = vsel %vm587, %v586, %v582
        %v592 = vlaneseq
        %v593 = vshrl.u32 %v592, 7
        %v594 = vsub.s32 7, %v593
        %v595 = vrot.slane %v343, %v594
        %v596 = vlaneseq
        %v597 = vshrl.u32 %v596, 7
        %v598 = vsub.s32 7, %v597
        %v599 = vrot.slane %v344, %v598
        %v600 = vmul.f32 %v588, %v595
        %v601 = vmul.f32 %v590, %v599
        %v602 = vmul.f32 %v589, %v595
        %v603 = vmul.f32 %v591, %v599
        %v604 = vpack.c.bf16 %v602, %v600
        %v605 = vpack.c.bf16 %v603, %v601
        %606 = vrot.lane.b32.xlu0 %v409, 111
        %v607 = vpop.permute.xlu0 %606
        %608 = vrot.lane.b32.xlu0 %v411, 111
        %v609 = vpop.permute.xlu0 %608
        %610 = vrot.lane.b32.xlu0 %v410, 111
        %v611 = vpop.permute.xlu0 %610
        %612 = vrot.lane.b32.xlu0 %v412, 111
        %v613 = vpop.permute.xlu0 %612
        %vm614 = vcmp.lt.s32.totalorder %v422, 111
        %v615 = vsel %vm614, %v607, %v611
        %v616 = vsel %vm614, %v609, %v613
        %v617 = vsel %vm614, %v611, %v607
        %v618 = vsel %vm614, %v613, %v609
        %v619 = vlaneseq
        %v620 = vshrl.u32 %v619, 7
        %v621 = vsub.s32 0, %v620
        %v622 = vrot.slane %v345, %v621
        %v623 = vlaneseq
        %v624 = vshrl.u32 %v623, 7
        %v625 = vsub.s32 0, %v624
        %v626 = vrot.slane %v346, %v625
        %v627 = vmul.f32 %v615, %v622
        %v628 = vmul.f32 %v617, %v626
        %v629 = vmul.f32 %v616, %v622
        %v630 = vmul.f32 %v618, %v626
        %v631 = vpack.c.bf16 %v629, %v627
        %v632 = vpack.c.bf16 %v630, %v628
        %634 = vset.pattern.permute.xlu0 0
        %635 = vperm.xlu0 %634, %v337
        %v636 = vpop.permute.xlu0 %635
        %639 = vset.pattern.permute.xlu0 0
        %640 = vperm.xlu0 %639, %v338
        %v641 = vpop.permute.xlu0 %640
        %v645 = vunpack.c.l.b16 %v335
        %v646 = vunpack.c.h.b16 %v335
        %v647 = vunpack.c.l.b16 %v336
        %v648 = vunpack.c.h.b16 %v336
        %v649 = vpack.c.b16 %v647, %v645
        %v650 = vpack.c.b16 %v648, %v646
        %v653 = vsel %vm362, %v650, 0
        %655 = vmatprep.subr.bf16.mxu0 %v441
        %656 = vmatpush1.bf16.msra.mxu0 %v440
        %657 = vmatprep.subr.bf16.mxu0 %v468
        %658 = vmatpush1.bf16.msra.mxu0 %v467
        %659 = vmatprep.subr.bf16.mxu0 %v495
        %660 = vmatpush1.bf16.msra.mxu0 %v494
        %661 = vmatprep.subr.bf16.mxu0 %v522
        %662 = vmatpush1.bf16.msra.mxu0 %v521
        %663 = vmatprep.subr.bf16.mxu0 %v524
        %664 = vmatpush1.bf16.msra.mxu0 %v523
        %665 = vmatprep.subr.bf16.mxu0 %v551
        %666 = vmatpush1.bf16.msra.mxu0 %v550
        %667 = vmatprep.subr.bf16.mxu0 %v578
        %668 = vmatpush1.bf16.msra.mxu0 %v577
        %669 = vmatprep.subr.bf16.mxu0 %v605
        %670 = vmatpush1.bf16.msra.mxu0 %v604
        %671 = vmatprep.subr.bf16.mxu0 %v632
        %672 = vmatpush1.bf16.msra.mxu0 %v631
        %673 = vmatprep.subr.bf16.mxu0 0
        %674 = vmatpush1.bf16.msra.mxu0 0
        %675 = vmatprep.subr.bf16.mxu0 0
        %676 = vmatpush1.bf16.msra.mxu0 0
        %677 = vmatprep.subr.bf16.mxu0 0
        %678 = vmatpush1.bf16.msra.mxu0 0
        %679 = vmatprep.subr.bf16.mxu0 0
        %680 = vmatpush1.bf16.msra.mxu0 0
        %681 = vmatprep.subr.bf16.mxu0 0
        %682 = vmatpush1.bf16.msra.mxu0 0
        %683 = vmatprep.subr.bf16.mxu0 0
        %684 = vmatpush1.bf16.msra.mxu0 0
        %685 = vmatprep.subr.bf16.mxu0 0
        %686 = vmatpush1.bf16.msra.mxu0 0
        %687 = vmatprep.mubr.bf16.mxu0 %v653
        %688 = vmatmul.mubr.bf16.gmra.mrb[0].mxu0 %v649
        %v689 = vpop.f32.mrb[0].mxu0
        %v690 = vadd.f32 %v636, %v689
        %v691 = vpop.f32.mrb[0].mxu0
        %v692 = vadd.f32 %v636, %v691
        %v693 = vpop.f32.mrb[0].mxu0
        %v694 = vadd.f32 %v641, %v693
        %v695 = vpop.f32.mrb[0].mxu0
        %v696 = vadd.f32 %v641, %v695
        %697 = vdwg.mxu0
        %v698 = vmax.f32 %v690, 0.0
        %v699 = vmax.f32 %v692, 0.0
        %v700 = vmax.f32 %v694, 0.0
        %v701 = vmax.f32 %v696, 0.0
        %v702 = vpack.c.bf16 %v700, %v698
        %v703 = vpack.c.bf16 %v701, %v699
        %705 = vset.pattern.permute.xlu0 0
        %706 = vperm.xlu0 %705, %v341
        %v707 = vpop.permute.xlu0 %706
        %710 = vset.pattern.permute.xlu0 0
        %711 = vperm.xlu0 %710, %v342
        %v712 = vpop.permute.xlu0 %711
        %v716 = vunpack.c.l.b16 %v339
        %v717 = vunpack.c.l.b16 %v340
        %v718 = vpack.c.b16 %v717, %v716
        %v720 = vsel %vm362, %v718, 0
        %722 = vmatprep.subr.bf16.mxu0 %v703
        %723 = vmatpush1.bf16.msra.mxu0 %v702
        %724 = vmatprep.subr.bf16.mxu0 0
        %725 = vmatpush1.bf16.msra.mxu0 0
        %726 = vmatprep.subr.bf16.mxu0 0
        %727 = vmatpush1.bf16.msra.mxu0 0
        %728 = vmatprep.subr.bf16.mxu0 0
        %729 = vmatpush1.bf16.msra.mxu0 0
        %730 = vmatprep.subr.bf16.mxu0 0
        %731 = vmatpush1.bf16.msra.mxu0 0
        %732 = vmatprep.subr.bf16.mxu0 0
        %733 = vmatpush1.bf16.msra.mxu0 0
        %734 = vmatprep.subr.bf16.mxu0 0
        %735 = vmatpush1.bf16.msra.mxu0 0
        %736 = vmatprep.subr.bf16.mxu0 0
        %737 = vmatpush1.bf16.msra.mxu0 0
        %738 = vmatprep.subr.bf16.mxu0 0
        %739 = vmatpush1.bf16.msra.mxu0 0
        %740 = vmatprep.subr.bf16.mxu0 0
        %741 = vmatpush1.bf16.msra.mxu0 0
        %742 = vmatprep.subr.bf16.mxu0 0
        %743 = vmatpush1.bf16.msra.mxu0 0
        %744 = vmatprep.subr.bf16.mxu0 0
        %745 = vmatpush1.bf16.msra.mxu0 0
        %746 = vmatprep.subr.bf16.mxu0 0
        %747 = vmatpush1.bf16.msra.mxu0 0
        %748 = vmatprep.subr.bf16.mxu0 0
        %749 = vmatpush1.bf16.msra.mxu0 0
        %750 = vmatprep.subr.bf16.mxu0 0
        %751 = vmatpush1.bf16.msra.mxu0 0
        %752 = vmatprep.subr.bf16.mxu0 0
        %753 = vmatpush1.bf16.msra.mxu0 0
        %754 = vmatprep.mubr.bf16.mxu0 0
        %755 = vmatmul.mubr.bf16.gmra.mrb[0].mxu0 %v720
        %v756 = vpop.f32.mrb[0].mxu0
        %v757 = vadd.f32 %v707, %v756
        %v758 = vpop.f32.mrb[0].mxu0
        %v759 = vadd.f32 %v707, %v758
        %v760 = vpop.f32.mrb[0].mxu0
        %v761 = vadd.f32 %v712, %v760
        %v762 = vpop.f32.mrb[0].mxu0
        %v763 = vadd.f32 %v712, %v762
        %764 = vdwg.mxu0
        %v765 = vadd.f32 %v757, %v325
        %v766 = vadd.f32 %v759, %v326
        %v767 = vadd.f32 %v761, %v327
        %v768 = vadd.f32 %v763, %v328
        %v769 = vmax.f32 %v765, 0.0
        %v770 = vmax.f32 %v766, 0.0
        %v771 = vmax.f32 %v767, 0.0
        %v772 = vmax.f32 %v768, 0.0
        %773 = vst [vmem:[%s323] sm:$0xff] %v769
        %774 = vst [vmem:[%s323 + $0x8] sm:$0xff] %v770
        %775 = vst [vmem:[%s323 + $0x10] sm:$0xff] %v771
        %776 = vst [vmem:[%s323 + $0x18] sm:$0xff] %v772
        %s777 = sand.u32 %s206, 1
        %s778 = scalar_lea.sflag [#allocation4], %s777
        %s779 = sand.u32 %s206, 1
        %s780 = smul.addr %s779, 32
        %s781 = scalar_lea.vmem [#allocation5], %s780
        // Predicated region
        $region57: #{tpu_custom_call.1} parent=51 // pred_check
          %p782 = pneg %p216
        $region58: #{tpu_custom_call.1} parent=51 // pred_check_branch
          %784 = sbr.rel (%p782) target = $region60
        $region59: #{tpu_custom_call.1} parent=51 // pred_region
          %s786 = ssub.s32 512, 512
          %787 = vsyncadd %s778, %s786
          %s788 = smul.addr %s25, 4
          %s789 = smul.addr %s788, 128
          %s790 = scalar_lea.hbm %s8, %s789
          %s791 = sshll.u32 %s781, 4
          %s792 = int_to_ptr.vmem [resolvable:$true] %s791
          %797 = dma.vmem_to_hbm [thread:$0]  %s792, 512, %s790, %s778, 256, 256, 16
        $region60: #{tpu_custom_call.1} parent=51 // pred_fallthru
          _
      $region52: #{tpu_custom_call.1} parent=5 // pred_fallthru
        _
      %p798 = scmp.le.s32.totalorder 2, %s20
      // Predicated region
      $region61: #{tpu_custom_call.1} parent=5 // pred_check
        %p799 = pneg %p798
      $region62: #{tpu_custom_call.1} parent=5 // pred_check_branch
        %801 = sbr.rel (%p799) target = $region64
      $region63: #{tpu_custom_call.1} parent=5 // pred_region
        %s802 = ssub.s32 %s20, 2
        // Predicated region
        $region65: #{tpu_custom_call.1} parent=63 // pred_check
          %p803 = pneg %p222
        $region66: #{tpu_custom_call.1} parent=63 // pred_check_branch
          %805 = sbr.rel (%p803) target = $region68
        $region67: #{tpu_custom_call.1} parent=63 // pred_region
          %s806 = sand.u32 %s207, 1
          %s807 = scalar_lea.sflag [#allocation4], %s806
          %s808 = sand.u32 %s207, 1
          %s809 = smul.addr %s808, 32
          %s810 = scalar_lea.vmem [#allocation5], %s809
          %811 = dma.done %s807, 512
        $region68: #{tpu_custom_call.1} parent=63 // pred_fallthru
          _
      $region64: #{tpu_custom_call.1} parent=5 // pred_fallthru
        _
    $region6: #{tpu_custom_call.1} parent=1 // loop_footer
      %s24 = sadd.s32 1, %s20
    $region7: #{tpu_custom_call.1} parent=1 // loop_footer_branch
      %19 = sbr.rel target = $region3
    $region8: #{tpu_custom_call.1} parent=1 // loop_exit
      _
    %812 = vsyncpa [#allocation3], 1
    %s813 = scalar_lea.sflag [#allocation3], 1
    %814 = vsyncpa %s813, 1
    %815 = vsyncpa [#allocation4], 1
    %s816 = scalar_lea.sflag [#allocation4], 1
    %817 = vsyncpa %s816, 1

</llo_original>
